<compile_context>
chip_gen: v6e
topology: v6e:2x2x1
jax: 0.10.0
libtpu: 0.0.40
codegen_flags: <defaults>
</compile_context>

<pallas_src>
import math

import jax
import jax.numpy as jnp
from jax.experimental import pallas as pl
from jax.experimental.pallas import tpu as pltpu

LANE = 128     # lane width (last-dim tiling)
SUBLANE = 8    # sublane width (second-to-last-dim tiling, f32)


def _round_up(x, m):
    return ((x + m - 1) // m) * m


def dqn_mlp_kernel(x_ref, w1_ref, b1_ref, w2_ref, b2_ref, w3_ref, b3_ref, o_ref):
    """Fused 3-layer MLP on one batch tile: relu(x@W1+b1) -> relu(@W2+b2) -> @W3+b3.

    Weights/biases and all elementwise math are float32 (fast on every TPU
    generation; MXU is nowhere near the bottleneck).  The streamed x tile may
    arrive as bf16 (halved HBM read stream on v6e/v7x) and is widened once
    here — a tiny (tb, state_size) cast after the DMA.
    """
    x = x_ref[...].astype(jnp.float32)

    h1 = jnp.dot(x, w1_ref[...], preferred_element_type=jnp.float32) + b1_ref[...]
    h1 = jnp.maximum(h1, 0.0)                                  # F.relu

    h2 = jnp.dot(h1, w2_ref[...], preferred_element_type=jnp.float32) + b2_ref[...]
    h2 = jnp.maximum(h2, 0.0)                                  # F.relu

    q = jnp.dot(h2, w3_ref[...], preferred_element_type=jnp.float32) + b3_ref[...]
    o_ref[...] = q.astype(o_ref.dtype)                         # lane-dense (128-wide) store


def init_params(key, state_size, action_size, hidden_layers=(64, 64)):
    """Deterministic init mirroring nn.Linear defaults: U(-1/sqrt(fan_in), +).

    Weights stored as [in_features, out_features]; biases as [1, out_features].
    """
    sizes = [state_size] + list(hidden_layers) + [action_size]
    params = {}
    for i, (fan_in, fan_out) in enumerate(zip(sizes[:-1], sizes[1:]), start=1):
        key, kw, kb = jax.random.split(key, 3)
        bound = 1.0 / math.sqrt(fan_in)
        params[f"w{i}"] = jax.random.uniform(
            kw, (fan_in, fan_out), jnp.float32, minval=-bound, maxval=bound
        )
        params[f"b{i}"] = jax.random.uniform(
            kb, (1, fan_out), jnp.float32, minval=-bound, maxval=bound
        )
    return params


def prepare_params(params):
    """Pad each layer's *output* features to a multiple of 128 lanes (f32 only).

    W1 keeps K = state_size exactly (no feature-lane padding of the streamed
    input); deeper layers take K = previous padded output width with the extra
    rows zero-filled, so the padding is numerically inert (padded bias columns
    are 0 and ReLU(0) = 0).  Everything stays float32: bf16 weights buy nothing
    (they are VMEM-resident) and cost extra VALU casts on v5e.
    """
    n_layers = len(params) // 2
    assert n_layers == 3, "kernel is specialised for two hidden layers + output"
    prepped = {}
    k_p = params["w1"].shape[0]            # K of layer 1 = state_size, unpadded
    for i in range(1, n_layers + 1):
        w = params[f"w{i}"]
        b = params[f"b{i}"]
        n_p = _round_up(w.shape[1], LANE)
        w_p = jnp.zeros((k_p, n_p), jnp.float32).at[: w.shape[0], : w.shape[1]].set(w)
        b_p = jnp.zeros((1, n_p), jnp.float32).at[:, : b.shape[1]].set(b)
        prepped[f"w{i}"] = w_p
        prepped[f"b{i}"] = b_p
        k_p = n_p
    return prepped


def dqn_forward(state, prepped, action_size, *, block_b=1024, stream_dtype=None):
    """Runs the fused MLP Pallas kernel over a batch-tiled grid.

    state:   [B, state_size] float32 (or bf16)
    prepped: output of prepare_params()
    Returns: [B, action_size] float32 Q-values.
    """
    B, in_features = state.shape
    assert prepped["w1"].shape[0] == in_features

    h1_p = prepped["w1"].shape[1]
    h2_p = prepped["w2"].shape[1]
    out_p = prepped["w3"].shape[1]

    # Optional v6e/v7x path: stream the activations as bf16 (halves the
    # dominant HBM read when state_size is large).  Single fused cast, no pad pass.
    if stream_dtype is not None and state.dtype != stream_dtype:
        state = state.astype(stream_dtype)

    # Batch tile: as large as reasonable (amortise per-step overhead), but keep
    # >= 2 grid steps when B allows it so v7x's second TensorCore gets work.
    block_b = _round_up(block_b, SUBLANE)
    tb = min(block_b, _round_up(B, SUBLANE))
    if B > SUBLANE and pl.cdiv(B, tb) < 2:
        tb = _round_up(pl.cdiv(B, 2), SUBLANE)
    grid = (pl.cdiv(B, tb),)

    w_bytes = sum(int(v.size) * v.dtype.itemsize for v in prepped.values())
    cost = pl.CostEstimate(
        flops=int(2 * B * (in_features * h1_p + h1_p * h2_p + h2_p * out_p)),
        transcendentals=0,
        bytes_accessed=int(state.size) * state.dtype.itemsize + w_bytes + int(B) * out_p * 4,
    )

    def resident(shape):
        # Same block index every grid step -> stays resident in VMEM (no re-DMA).
        return pl.BlockSpec(shape, lambda i: (0, 0))

    out = pl.pallas_call(
        dqn_mlp_kernel,
        out_shape=jax.ShapeDtypeStruct((B, out_p), jnp.float32),
        grid=grid,
        in_specs=[
            # Streamed state tile; ragged batch tail handled by boundary clipping
            # (garbage rows never reach valid output rows).
            pl.BlockSpec((tb, in_features), lambda i: (i, 0)),
            resident((in_features, h1_p)), resident((1, h1_p)),
            resident((h1_p, h2_p)), resident((1, h2_p)),
            resident((h2_p, out_p)), resident((1, out_p)),
        ],
        out_specs=pl.BlockSpec((tb, out_p), lambda i: (i, 0)),
        compiler_params=pltpu.CompilerParams(
            dimension_semantics=("parallel",),        # v7x: shard tiles across both TCs
            vmem_limit_bytes=32 * 1024 * 1024,        # clears v5e's 16 MiB default; fits v7x's 64 MiB physical
        ),
        cost_estimate=cost,
    )(
        state,
        prepped["w1"], prepped["b1"],
        prepped["w2"], prepped["b2"],
        prepped["w3"], prepped["b3"],
    )

    return out[:, :action_size]


def reference_forward(state, params):
    """Pure-JAX reference of the PyTorch forward pass (unpadded, f32)."""
    x = state
    x = jnp.maximum(x @ params["w1"] + params["b1"], 0.0)
    x = jnp.maximum(x @ params["w2"] + params["b2"], 0.0)
    return x @ params["w3"] + params["b3"]


if __name__ == "__main__":
    state_size = 8
    action_size = 4
    hidden_layers = (64, 64)

    key = jax.random.PRNGKey(0)
    key_x1, key_x2, key_p = jax.random.split(key, 3)

    params = init_params(key_p, state_size, action_size, hidden_layers)
    prepped = prepare_params(params)

    # Small batch (single grid step, batch tile clipped to the array bounds).
    state_small = jax.random.normal(key_x1, (2, state_size), dtype=jnp.float32)
    q_small = jax.block_until_ready(dqn_forward(state_small, prepped, action_size))
    q_small_ref = reference_forward(state_small, params)
    assert q_small.shape == (2, action_size)
    assert jnp.allclose(q_small, q_small_ref, atol=1e-4, rtol=1e-4), "small-batch mismatch"

    # Larger batch with a ragged tail: exercises the multi-step "parallel" grid
    # (>= 2 steps for v7x) and boundary-block clipping of the tail tile.
    state_big = jax.random.normal(key_x2, (1000, state_size), dtype=jnp.float32)
    q_big = jax.block_until_ready(dqn_forward(state_big, prepped, action_size))
    q_big_ref = reference_forward(state_big, params)
    assert q_big.shape == (1000, action_size)
    assert jnp.allclose(q_big, q_big_ref, atol=1e-4, rtol=1e-4), "big-batch mismatch"

    # bf16 *streamed activations* (v6e/v7x HBM-saving path); weights stay f32.
    q_bf16 = jax.block_until_ready(
        dqn_forward(state_big, prepped, action_size, stream_dtype=jnp.bfloat16)
    )
    assert q_bf16.shape == (1000, action_size)
    assert jnp.allclose(q_bf16, q_big_ref, atol=5e-2, rtol=5e-2), "bf16-stream mismatch"

    print("KERNEL_OK")
</pallas_src>

<mosaic_0001>
module attributes {stable_mosaic.version = 11 : i64} {
  func.func @dqn_mlp_kernel(%arg0: i32, %arg1: memref<8x8xf32, #tpu.memory_space<vmem>>, %arg2: memref<8x128xf32, #tpu.memory_space<vmem>>, %arg3: memref<1x128xf32, #tpu.memory_space<vmem>>, %arg4: memref<128x128xf32, #tpu.memory_space<vmem>>, %arg5: memref<1x128xf32, #tpu.memory_space<vmem>>, %arg6: memref<128x128xf32, #tpu.memory_space<vmem>>, %arg7: memref<1x128xf32, #tpu.memory_space<vmem>>, %arg8: memref<8x128xf32, #tpu.memory_space<vmem>>) attributes {dimension_semantics = [#tpu.dimension_semantics<parallel>], iteration_bounds = array<i64: 1>, scalar_prefetch = 0 : i64, scratch_operands = 0 : i64, tpu.core_type = #tpu.core_type<tc>, window_params = [{transform_indices = @transform_0, window_bounds = array<i64: 8, 8>}, {pipeline_mode = #tpu.pipeline_mode<synchronous>, transform_indices = @transform_1, window_bounds = array<i64: 8, 128>}, {pipeline_mode = #tpu.pipeline_mode<synchronous>, transform_indices = @transform_2, window_bounds = array<i64: 1, 128>}, {pipeline_mode = #tpu.pipeline_mode<synchronous>, transform_indices = @transform_3, window_bounds = array<i64: 128, 128>}, {pipeline_mode = #tpu.pipeline_mode<synchronous>, transform_indices = @transform_4, window_bounds = array<i64: 1, 128>}, {pipeline_mode = #tpu.pipeline_mode<synchronous>, transform_indices = @transform_5, window_bounds = array<i64: 128, 128>}, {pipeline_mode = #tpu.pipeline_mode<synchronous>, transform_indices = @transform_6, window_bounds = array<i64: 1, 128>}, {transform_indices = @transform_7, window_bounds = array<i64: 8, 128>}]} {
    %c0 = arith.constant 0 : index
    %c0_0 = arith.constant 0 : index
    %0 = vector.load %arg1[%c0, %c0_0] : memref<8x8xf32, #tpu.memory_space<vmem>>, vector<8x8xf32>
    %c0_1 = arith.constant 0 : index
    %c0_2 = arith.constant 0 : index
    %1 = vector.load %arg2[%c0_1, %c0_2] : memref<8x128xf32, #tpu.memory_space<vmem>>, vector<8x128xf32>
    %cst = arith.constant dense<0.000000e+00> : vector<8x128xf32>
    %2 = tpu.matmul %0, %1, %cst {dimension_numbers = #tpu.dot_dimension_numbers<[1], [0], [0], [1], [0, 0, 1, 1], [], []>} : vector<8x8xf32>, vector<8x128xf32>, vector<8x128xf32> -> vector<8x128xf32>
    %c0_3 = arith.constant 0 : index
    %c0_4 = arith.constant 0 : index
    %3 = vector.load %arg3[%c0_3, %c0_4] : memref<1x128xf32, #tpu.memory_space<vmem>>, vector<1x128xf32>
    %4 = vector.broadcast %3 : vector<1x128xf32> to vector<8x128xf32>
    %5 = arith.addf %2, %4 : vector<8x128xf32>
    %cst_5 = arith.constant 0.000000e+00 : f32
    %6 = vector.broadcast %cst_5 : f32 to vector<8x128xf32>
    %7 = arith.maximumf %5, %6 : vector<8x128xf32>
    %c0_6 = arith.constant 0 : index
    %c0_7 = arith.constant 0 : index
    %8 = vector.load %arg4[%c0_6, %c0_7] : memref<128x128xf32, #tpu.memory_space<vmem>>, vector<128x128xf32>
    %cst_8 = arith.constant dense<0.000000e+00> : vector<8x128xf32>
    %9 = tpu.matmul %7, %8, %cst_8 {dimension_numbers = #tpu.dot_dimension_numbers<[1], [0], [0], [1], [0, 0, 1, 1], [], []>} : vector<8x128xf32>, vector<128x128xf32>, vector<8x128xf32> -> vector<8x128xf32>
    %c0_9 = arith.constant 0 : index
    %c0_10 = arith.constant 0 : index
    %10 = vector.load %arg5[%c0_9, %c0_10] : memref<1x128xf32, #tpu.memory_space<vmem>>, vector<1x128xf32>
    %11 = vector.broadcast %10 : vector<1x128xf32> to vector<8x128xf32>
    %12 = arith.addf %9, %11 : vector<8x128xf32>
    %cst_11 = arith.constant 0.000000e+00 : f32
    %13 = vector.broadcast %cst_11 : f32 to vector<8x128xf32>
    %14 = arith.maximumf %12, %13 : vector<8x128xf32>
    %c0_12 = arith.constant 0 : index
    %c0_13 = arith.constant 0 : index
    %15 = vector.load %arg6[%c0_12, %c0_13] : memref<128x128xf32, #tpu.memory_space<vmem>>, vector<128x128xf32>
    %cst_14 = arith.constant dense<0.000000e+00> : vector<8x128xf32>
    %16 = tpu.matmul %14, %15, %cst_14 {dimension_numbers = #tpu.dot_dimension_numbers<[1], [0], [0], [1], [0, 0, 1, 1], [], []>} : vector<8x128xf32>, vector<128x128xf32>, vector<8x128xf32> -> vector<8x128xf32>
    %c0_15 = arith.constant 0 : index
    %c0_16 = arith.constant 0 : index
    %17 = vector.load %arg7[%c0_15, %c0_16] : memref<1x128xf32, #tpu.memory_space<vmem>>, vector<1x128xf32>
    %18 = vector.broadcast %17 : vector<1x128xf32> to vector<8x128xf32>
    %19 = arith.addf %16, %18 : vector<8x128xf32>
    %c0_17 = arith.constant 0 : index
    %c0_18 = arith.constant 0 : index
    %20 = vector.load %arg8[%c0_17, %c0_18] : memref<8x128xf32, #tpu.memory_space<vmem>>, vector<8x128xf32>
    tpu.vector_store %arg8[%c0_17, %c0_18], %19 {strides = array<i32>} : memref<8x128xf32, #tpu.memory_space<vmem>>, vector<8x128xf32>,
    return
  }
  func.func @transform_0(%arg0: i32) -> (i32, i32) {
    %c0_i32 = arith.constant 0 : i32
    %c0_i32_0 = arith.constant 0 : i32
    return %arg0, %c0_i32 : i32, i32
  }
  func.func @transform_1(%arg0: i32) -> (i32, i32) {
    %c0_i32 = arith.constant 0 : i32
    %c0_i32_0 = arith.constant 0 : i32
    %c0_i32_1 = arith.constant 0 : i32
    return %c0_i32, %c0_i32_0 : i32, i32
  }
  func.func @transform_2(%arg0: i32) -> (i32, i32) {
    %c0_i32 = arith.constant 0 : i32
    %c0_i32_0 = arith.constant 0 : i32
    %c0_i32_1 = arith.constant 0 : i32
    return %c0_i32, %c0_i32_0 : i32, i32
  }
  func.func @transform_3(%arg0: i32) -> (i32, i32) {
    %c0_i32 = arith.constant 0 : i32
    %c0_i32_0 = arith.constant 0 : i32
    %c0_i32_1 = arith.constant 0 : i32
    return %c0_i32, %c0_i32_0 : i32, i32
  }
  func.func @transform_4(%arg0: i32) -> (i32, i32) {
    %c0_i32 = arith.constant 0 : i32
    %c0_i32_0 = arith.constant 0 : i32
    %c0_i32_1 = arith.constant 0 : i32
    return %c0_i32, %c0_i32_0 : i32, i32
  }
  func.func @transform_5(%arg0: i32) -> (i32, i32) {
    %c0_i32 = arith.constant 0 : i32
    %c0_i32_0 = arith.constant 0 : i32
    %c0_i32_1 = arith.constant 0 : i32
    return %c0_i32, %c0_i32_0 : i32, i32
  }
  func.func @transform_6(%arg0: i32) -> (i32, i32) {
    %c0_i32 = arith.constant 0 : i32
    %c0_i32_0 = arith.constant 0 : i32
    %c0_i32_1 = arith.constant 0 : i32
    return %c0_i32, %c0_i32_0 : i32, i32
  }
  func.func @transform_7(%arg0: i32) -> (i32, i32) {
    %c0_i32 = arith.constant 0 : i32
    %c0_i32_0 = arith.constant 0 : i32
    return %arg0, %c0_i32 : i32, i32
  }
}

</mosaic_0001>

<llo_original>
// kernel: tpu_custom_call.1
$region0: #{tpu_custom_call.1}
  #allocation0 [shape = 'u32[]', space=smem, size = 0x4, offset = 0x4, fixed_abs, tag = 'smem constant byte address 0x4 - core index']
  #allocation1 [shape = 'u32[144,128]{1,0:T(1,128)}', space=vmem, size = 0x12000, scoped, tag = 'internal scratch']
  %s0 = inlined_call_operand.hbm [shape: f32[2,8], index: 0, kind: input, shape index: {}]
  %s1 = inlined_call_operand.hbm [shape: f32[8,128], index: 1, kind: input, shape index: {}]
  %s2 = inlined_call_operand.vmem [shape: f32[1,128], index: 2, kind: input, shape index: {}]
  %s3 = inlined_call_operand.hbm [shape: f32[128,128], index: 3, kind: input, shape index: {}]
  %s4 = inlined_call_operand.vmem [shape: f32[1,128], index: 4, kind: input, shape index: {}]
  %s5 = inlined_call_operand.hbm [shape: f32[128,128], index: 5, kind: input, shape index: {}]
  %s6 = inlined_call_operand.vmem [shape: f32[1,128], index: 6, kind: input, shape index: {}]
  %s7 = inlined_call_operand.hbm [shape: f32[2,128], index: 7, kind: output, shape index: {}]
  %s8 = sld [smem:[#allocation0]]
  $region54: #{tpu_custom_call.1} parent=0
    _
  %s10 = ssub.s32 1, %s8
  %s11 = scalar_select 0, %s10, %s8
  $region1: #{tpu_custom_call.1} parent=0
    #allocation2 [shape = 'u8[4096]{0}', space=vmem, size = 0x1000, scoped, tag = 'input window, operand 0, single buffered']
    #allocation3 [shape = 's32[1]{0}', space=sflag, size = 0x4, scoped, tag = 'scoped memory for tpu_custom_call.1']
    #allocation4 [shape = 's32[1]{0}', space=sflag, size = 0x4, scoped, tag = 'scoped memory for tpu_custom_call.1']
    #allocation5 [shape = 'u8[4096]{0}', space=vmem, size = 0x1000, scoped, tag = 'input window, operand 1, single buffered']
    #allocation6 [shape = 's32[1]{0}', space=sflag, size = 0x4, scoped, tag = 'scoped memory for tpu_custom_call.1']
    #allocation7 [shape = 'u8[65536]{0}', space=vmem, size = 0x10000, scoped, tag = 'input window, operand 3, single buffered']
    #allocation8 [shape = 'u8[65536]{0}', space=vmem, size = 0x10000, scoped, tag = 'input window, operand 5, single buffered']
    #allocation9 [shape = 's32[1]{0}', space=sflag, size = 0x4, scoped, tag = 'scoped memory for tpu_custom_call.1']
    #allocation10 [shape = 'u8[4096]{0}', space=vmem, size = 0x1000, scoped, tag = 'output window, operand 0, single buffered']
    %12 = vsyncpa [#allocation3], 0
    %13 = vsyncpa [#allocation6], 0
    %14 = vsyncpa [#allocation9], 0
    %15 = vsyncpa [#allocation4], 0
    // Predicated region
    $region2: #{tpu_custom_call.1} parent=1 // pred_check
      _
    $region3: #{tpu_custom_call.1} parent=1 // pred_check_branch
      %17 = sbr.rel (0) target = $region5
    $region4: #{tpu_custom_call.1} parent=1 // pred_region
      %s19 = ssub.s32 128, 32
      %20 = vsyncadd [#allocation3], %s19
      %s21 = sshll.u32 [#allocation2], 4
      %s22 = int_to_ptr.vmem [resolvable:$true] %s21
      %27 = dma.hbm_to_vmem [thread:$0]  %s0, 32, %s22, [#allocation3], 32, 32, 2
    $region5: #{tpu_custom_call.1} parent=1 // pred_fallthru
      _
    // Predicated region
    $region6: #{tpu_custom_call.1} parent=1 // pred_check
      _
    $region7: #{tpu_custom_call.1} parent=1 // pred_check_branch
      %29 = sbr.rel (0) target = $region9
    $region8: #{tpu_custom_call.1} parent=1 // pred_region
      %s31 = ssub.s32 128, 128
      %32 = vsyncadd [#allocation6], %s31
      %s34 = sshll.u32 [#allocation5], 4
      %s35 = int_to_ptr.vmem [resolvable:$true] %s34
      %37 = dma.hbm_to_vmem [thread:$0]  %s1, 128, %s35, [#allocation6]
    $region9: #{tpu_custom_call.1} parent=1 // pred_fallthru
      _
    // Predicated region
    $region10: #{tpu_custom_call.1} parent=1 // pred_check
      _
    $region11: #{tpu_custom_call.1} parent=1 // pred_check_branch
      %39 = sbr.rel (0) target = $region13
    $region12: #{tpu_custom_call.1} parent=1 // pred_region
      _
    $region13: #{tpu_custom_call.1} parent=1 // pred_fallthru
      _
    // Predicated region
    $region14: #{tpu_custom_call.1} parent=1 // pred_check
      _
    $region15: #{tpu_custom_call.1} parent=1 // pred_check_branch
      %41 = sbr.rel (0) target = $region17
    $region16: #{tpu_custom_call.1} parent=1 // pred_region
      %s43 = ssub.s32 2048, 2048
      %44 = vsyncadd [#allocation6], %s43
      %s45 = sshll.u32 [#allocation7], 4
      %s46 = int_to_ptr.vmem [resolvable:$true] %s45
      %51 = dma.hbm_to_vmem [thread:$0]  %s3, 2048, %s46, [#allocation6], 128, 128, 8
    $region17: #{tpu_custom_call.1} parent=1 // pred_fallthru
      _
    // Predicated region
    $region18: #{tpu_custom_call.1} parent=1 // pred_check
      _
    $region19: #{tpu_custom_call.1} parent=1 // pred_check_branch
      %53 = sbr.rel (0) target = $region21
    $region20: #{tpu_custom_call.1} parent=1 // pred_region
      _
    $region21: #{tpu_custom_call.1} parent=1 // pred_fallthru
      _
    // Predicated region
    $region22: #{tpu_custom_call.1} parent=1 // pred_check
      _
    $region23: #{tpu_custom_call.1} parent=1 // pred_check_branch
      %55 = sbr.rel (0) target = $region25
    $region24: #{tpu_custom_call.1} parent=1 // pred_region
      %s57 = ssub.s32 2048, 2048
      %58 = vsyncadd [#allocation9], %s57
      %s59 = sshll.u32 [#allocation8], 4
      %s60 = int_to_ptr.vmem [resolvable:$true] %s59
      %65 = dma.hbm_to_vmem [thread:$0]  %s5, 2048, %s60, [#allocation9], 128, 128, 8
    $region25: #{tpu_custom_call.1} parent=1 // pred_fallthru
      _
    // Predicated region
    $region26: #{tpu_custom_call.1} parent=1 // pred_check
      _
    $region27: #{tpu_custom_call.1} parent=1 // pred_check_branch
      %67 = sbr.rel (0) target = $region29
    $region28: #{tpu_custom_call.1} parent=1 // pred_region
      _
    $region29: #{tpu_custom_call.1} parent=1 // pred_fallthru
      _
    // Predicated region
    $region30: #{tpu_custom_call.1} parent=1 // pred_check
      _
    $region31: #{tpu_custom_call.1} parent=1 // pred_check_branch
      %69 = sbr.rel (0) target = $region33
    $region32: #{tpu_custom_call.1} parent=1 // pred_region
      %70 = dma.done [#allocation3], 128
    $region33: #{tpu_custom_call.1} parent=1 // pred_fallthru
      _
    // Predicated region
    $region34: #{tpu_custom_call.1} parent=1 // pred_check
      _
    $region35: #{tpu_custom_call.1} parent=1 // pred_check_branch
      %72 = sbr.rel (0) target = $region37
    $region36: #{tpu_custom_call.1} parent=1 // pred_region
      %73 = dma.done [#allocation6], 128
    $region37: #{tpu_custom_call.1} parent=1 // pred_fallthru
      _
    // Predicated region
    $region38: #{tpu_custom_call.1} parent=1 // pred_check
      _
    $region39: #{tpu_custom_call.1} parent=1 // pred_check_branch
      %75 = sbr.rel (0) target = $region41
    $region40: #{tpu_custom_call.1} parent=1 // pred_region
      %76 = dma.done [#allocation6], 2048
    $region41: #{tpu_custom_call.1} parent=1 // pred_fallthru
      _
    // Predicated region
    $region42: #{tpu_custom_call.1} parent=1 // pred_check
      _
    $region43: #{tpu_custom_call.1} parent=1 // pred_check_branch
      %78 = sbr.rel (0) target = $region45
    $region44: #{tpu_custom_call.1} parent=1 // pred_region
      %79 = dma.done [#allocation9], 2048
    $region45: #{tpu_custom_call.1} parent=1 // pred_fallthru
      _
    %v80 = vld [vmem:[#allocation2] sm:$0xff]
    %v81 = vld [vmem:[#allocation5] sm:$0xff]
    %v82 = vld [vmem:[%s2] sm:$0x1]
    %v84 = vlaneseq
    %v85 = vshrl.u32 %v84, 7
    %v86 = vsub.s32 0, %v85
    %v87 = vrot.slane %v82, %v86
    %vm89 = vcmask 64512
    %v91 = vsel %vm89, %v80, 0
    %93 = vmatprep.subr.mxu0 0.0
    %94 = vmatpush1.msra.mxu0 0.0
    %95 = vmatprep.subr.mxu0 0.0
    %96 = vmatpush1.msra.mxu0 0.0
    %97 = vmatprep.subr.mxu0 0.0
    %98 = vmatpush1.msra.mxu0 0.0
    %99 = vmatprep.subr.mxu0 0.0
    %100 = vmatpush1.msra.mxu0 0.0
    %101 = vmatprep.subr.mxu0 0.0
    %102 = vmatpush1.msra.mxu0 0.0
    %103 = vmatprep.subr.mxu0 0.0
    %104 = vmatpush1.msra.mxu0 0.0
    %105 = vmatprep.subr.mxu0 0.0
    %106 = vmatpush1.msra.mxu0 0.0
    %107 = vmatprep.subr.mxu0 0.0
    %108 = vmatpush1.msra.mxu0 0.0
    %109 = vmatprep.subr.mxu0 0.0
    %110 = vmatpush1.msra.mxu0 0.0
    %111 = vmatprep.subr.mxu0 0.0
    %112 = vmatpush1.msra.mxu0 0.0
    %113 = vmatprep.subr.mxu0 0.0
    %114 = vmatpush1.msra.mxu0 0.0
    %115 = vmatprep.subr.mxu0 0.0
    %116 = vmatpush1.msra.mxu0 0.0
    %117 = vmatprep.subr.mxu0 0.0
    %118 = vmatpush1.msra.mxu0 0.0
    %119 = vmatprep.subr.mxu0 0.0
    %120 = vmatpush1.msra.mxu0 0.0
    %121 = vmatprep.subr.mxu0 0.0
    %122 = vmatpush1.msra.mxu0 0.0
    %123 = vmatprep.subr.mxu0 0.0
    %124 = vmatpush1.msra.mxu0 %v81
    %125 = vmatprep.subr.mxu0 0.0
    %126 = vmatpush2.msra.mxu0 0.0
    %127 = vmatprep.subr.mxu0 0.0
    %128 = vmatpush2.msra.mxu0 0.0
    %129 = vmatprep.subr.mxu0 0.0
    %130 = vmatpush2.msra.mxu0 0.0
    %131 = vmatprep.subr.mxu0 0.0
    %132 = vmatpush2.msra.mxu0 0.0
    %133 = vmatprep.subr.mxu0 0.0
    %134 = vmatpush2.msra.mxu0 0.0
    %135 = vmatprep.subr.mxu0 0.0
    %136 = vmatpush2.msra.mxu0 0.0
    %137 = vmatprep.subr.mxu0 0.0
    %138 = vmatpush2.msra.mxu0 0.0
    %139 = vmatprep.subr.mxu0 0.0
    %140 = vmatpush2.msra.mxu0 0.0
    %141 = vmatprep.subr.mxu0 0.0
    %142 = vmatpush2.msra.mxu0 0.0
    %143 = vmatprep.subr.mxu0 0.0
    %144 = vmatpush2.msra.mxu0 0.0
    %145 = vmatprep.subr.mxu0 0.0
    %146 = vmatpush2.msra.mxu0 0.0
    %147 = vmatprep.subr.mxu0 0.0
    %148 = vmatpush2.msra.mxu0 0.0
    %149 = vmatprep.subr.mxu0 0.0
    %150 = vmatpush2.msra.mxu0 0.0
    %151 = vmatprep.subr.mxu0 0.0
    %152 = vmatpush2.msra.mxu0 0.0
    %153 = vmatprep.subr.mxu0 0.0
    %154 = vmatpush2.msra.mxu0 0.0
    %155 = vmatprep.subr.mxu0 0.0
    %156 = vmatpush2.msra.mxu0 0.0
    %157 = vmatprep.mubr.f32.mxu0 0.0
    %158 = vmatmul.mubr.f32.gmra.mxu0 %v91
    %v159 = vpop.f32.mrf.mxu0
    %v160 = vadd.f32 %v87, %v159
    %v161 = vpop.f32.mrf.mxu0
    %162 = vdwg.mxu0
    %v163 = vmax.f32 %v160, 0.0
    %v164 = vld [vmem:[#allocation7] sm:$0xff]
    %v165 = vld [vmem:[#allocation7 + $0x8] sm:$0xff]
    %v166 = vld [vmem:[#allocation7 + $0x10] sm:$0xff]
    %v167 = vld [vmem:[#allocation7 + $0x18] sm:$0xff]
    %v168 = vld [vmem:[#allocation7 + $0x20] sm:$0xff]
    %v169 = vld [vmem:[#allocation7 + $0x28] sm:$0xff]
    %v170 = vld [vmem:[#allocation7 + $0x30] sm:$0xff]
    %v171 = vld [vmem:[#allocation7 + $0x38] sm:$0xff]
    %v172 = vld [vmem:[#allocation7 + $0x40] sm:$0xff]
    %v173 = vld [vmem:[#allocation7 + $0x48] sm:$0xff]
    %v174 = vld [vmem:[#allocation7 + $0x50] sm:$0xff]
    %v175 = vld [vmem:[#allocation7 + $0x58] sm:$0xff]
    %v176 = vld [vmem:[#allocation7 + $0x60] sm:$0xff]
    %v177 = vld [vmem:[#allocation7 + $0x68] sm:$0xff]
    %v178 = vld [vmem:[#allocation7 + $0x70] sm:$0xff]
    %v179 = vld [vmem:[#allocation7 + $0x78] sm:$0xff]
    %v180 = vld [vmem:[%s4] sm:$0x1]
    %v182 = vlaneseq
    %v183 = vshrl.u32 %v182, 7
    %v184 = vsub.s32 0, %v183
    %v185 = vrot.slane %v180, %v184
    %187 = vmatprep.subr.mxu0 0.0
    %188 = vmatpush1.msra.mxu0 %v179
    %189 = vmatprep.subr.mxu0 0.0
    %190 = vmatpush1.msra.mxu0 %v178
    %191 = vmatprep.subr.mxu0 0.0
    %192 = vmatpush1.msra.mxu0 %v177
    %193 = vmatprep.subr.mxu0 0.0
    %194 = vmatpush1.msra.mxu0 %v176
    %195 = vmatprep.subr.mxu0 0.0
    %196 = vmatpush1.msra.mxu0 %v175
    %197 = vmatprep.subr.mxu0 0.0
    %198 = vmatpush1.msra.mxu0 %v174
    %199 = vmatprep.subr.mxu0 0.0
    %200 = vmatpush1.msra.mxu0 %v173
    %201 = vmatprep.subr.mxu0 0.0
    %202 = vmatpush1.msra.mxu0 %v172
    %203 = vmatprep.subr.mxu0 0.0
    %204 = vmatpush1.msra.mxu0 %v171
    %205 = vmatprep.subr.mxu0 0.0
    %206 = vmatpush1.msra.mxu0 %v170
    %207 = vmatprep.subr.mxu0 0.0
    %208 = vmatpush1.msra.mxu0 %v169
    %209 = vmatprep.subr.mxu0 0.0
    %210 = vmatpush1.msra.mxu0 %v168
    %211 = vmatprep.subr.mxu0 0.0
    %212 = vmatpush1.msra.mxu0 %v167
    %213 = vmatprep.subr.mxu0 0.0
    %214 = vmatpush1.msra.mxu0 %v166
    %215 = vmatprep.subr.mxu0 0.0
    %216 = vmatpush1.msra.mxu0 %v165
    %217 = vmatprep.subr.mxu0 0.0
    %218 = vmatpush1.msra.mxu0 %v164
    %219 = vmatprep.subr.mxu0 0.0
    %220 = vmatpush2.msra.mxu0 0.0
    %221 = vmatprep.subr.mxu0 0.0
    %222 = vmatpush2.msra.mxu0 0.0
    %223 = vmatprep.subr.mxu0 0.0
    %224 = vmatpush2.msra.mxu0 0.0
    %225 = vmatprep.subr.mxu0 0.0
    %226 = vmatpush2.msra.mxu0 0.0
    %227 = vmatprep.subr.mxu0 0.0
    %228 = vmatpush2.msra.mxu0 0.0
    %229 = vmatprep.subr.mxu0 0.0
    %230 = vmatpush2.msra.mxu0 0.0
    %231 = vmatprep.subr.mxu0 0.0
    %232 = vmatpush2.msra.mxu0 0.0
    %233 = vmatprep.subr.mxu0 0.0
    %234 = vmatpush2.msra.mxu0 0.0
    %235 = vmatprep.subr.mxu0 0.0
    %236 = vmatpush2.msra.mxu0 0.0
    %237 = vmatprep.subr.mxu0 0.0
    %238 = vmatpush2.msra.mxu0 0.0
    %239 = vmatprep.subr.mxu0 0.0
    %240 = vmatpush2.msra.mxu0 0.0
    %241 = vmatprep.subr.mxu0 0.0
    %242 = vmatpush2.msra.mxu0 0.0
    %243 = vmatprep.subr.mxu0 0.0
    %244 = vmatpush2.msra.mxu0 0.0
    %245 = vmatprep.subr.mxu0 0.0
    %246 = vmatpush2.msra.mxu0 0.0
    %247 = vmatprep.subr.mxu0 0.0
    %248 = vmatpush2.msra.mxu0 0.0
    %249 = vmatprep.subr.mxu0 0.0
    %250 = vmatpush2.msra.mxu0 0.0
    %251 = vmatprep.mubr.f32.mxu0 0.0
    %252 = vmatmul.mubr.f32.gmra.mxu0 %v163
    %v253 = vpop.f32.mrf.mxu0
    %v254 = vadd.f32 %v185, %v253
    %v255 = vpop.f32.mrf.mxu0
    %256 = vdwg.mxu0
    %v257 = vmax.f32 %v254, 0.0
    %v258 = vld [vmem:[#allocation8] sm:$0xff]
    %v259 = vld [vmem:[#allocation8 + $0x8] sm:$0xff]
    %v260 = vld [vmem:[#allocation8 + $0x10] sm:$0xff]
    %v261 = vld [vmem:[#allocation8 + $0x18] sm:$0xff]
    %v262 = vld [vmem:[#allocation8 + $0x20] sm:$0xff]
    %v263 = vld [vmem:[#allocation8 + $0x28] sm:$0xff]
    %v264 = vld [vmem:[#allocation8 + $0x30] sm:$0xff]
    %v265 = vld [vmem:[#allocation8 + $0x38] sm:$0xff]
    %v266 = vld [vmem:[#allocation8 + $0x40] sm:$0xff]
    %v267 = vld [vmem:[#allocation8 + $0x48] sm:$0xff]
    %v268 = vld [vmem:[#allocation8 + $0x50] sm:$0xff]
    %v269 = vld [vmem:[#allocation8 + $0x58] sm:$0xff]
    %v270 = vld [vmem:[#allocation8 + $0x60] sm:$0xff]
    %v271 = vld [vmem:[#allocation8 + $0x68] sm:$0xff]
    %v272 = vld [vmem:[#allocation8 + $0x70] sm:$0xff]
    %v273 = vld [vmem:[#allocation8 + $0x78] sm:$0xff]
    %v274 = vld [vmem:[%s6] sm:$0x1]
    %v276 = vlaneseq
    %v277 = vshrl.u32 %v276, 7
    %v278 = vsub.s32 0, %v277
    %v279 = vrot.slane %v274, %v278
    %281 = vmatprep.subr.mxu0 0.0
    %282 = vmatpush1.msra.mxu0 %v273
    %283 = vmatprep.subr.mxu0 0.0
    %284 = vmatpush1.msra.mxu0 %v272
    %285 = vmatprep.subr.mxu0 0.0
    %286 = vmatpush1.msra.mxu0 %v271
    %287 = vmatprep.subr.mxu0 0.0
    %288 = vmatpush1.msra.mxu0 %v270
    %289 = vmatprep.subr.mxu0 0.0
    %290 = vmatpush1.msra.mxu0 %v269
    %291 = vmatprep.subr.mxu0 0.0
    %292 = vmatpush1.msra.mxu0 %v268
    %293 = vmatprep.subr.mxu0 0.0
    %294 = vmatpush1.msra.mxu0 %v267
    %295 = vmatprep.subr.mxu0 0.0
    %296 = vmatpush1.msra.mxu0 %v266
    %297 = vmatprep.subr.mxu0 0.0
    %298 = vmatpush1.msra.mxu0 %v265
    %299 = vmatprep.subr.mxu0 0.0
    %300 = vmatpush1.msra.mxu0 %v264
    %301 = vmatprep.subr.mxu0 0.0
    %302 = vmatpush1.msra.mxu0 %v263
    %303 = vmatprep.subr.mxu0 0.0
    %304 = vmatpush1.msra.mxu0 %v262
    %305 = vmatprep.subr.mxu0 0.0
    %306 = vmatpush1.msra.mxu0 %v261
    %307 = vmatprep.subr.mxu0 0.0
    %308 = vmatpush1.msra.mxu0 %v260
    %309 = vmatprep.subr.mxu0 0.0
    %310 = vmatpush1.msra.mxu0 %v259
    %311 = vmatprep.subr.mxu0 0.0
    %312 = vmatpush1.msra.mxu0 %v258
    %313 = vmatprep.subr.mxu0 0.0
    %314 = vmatpush2.msra.mxu0 0.0
    %315 = vmatprep.subr.mxu0 0.0
    %316 = vmatpush2.msra.mxu0 0.0
    %317 = vmatprep.subr.mxu0 0.0
    %318 = vmatpush2.msra.mxu0 0.0
    %319 = vmatprep.subr.mxu0 0.0
    %320 = vmatpush2.msra.mxu0 0.0
    %321 = vmatprep.subr.mxu0 0.0
    %322 = vmatpush2.msra.mxu0 0.0
    %323 = vmatprep.subr.mxu0 0.0
    %324 = vmatpush2.msra.mxu0 0.0
    %325 = vmatprep.subr.mxu0 0.0
    %326 = vmatpush2.msra.mxu0 0.0
    %327 = vmatprep.subr.mxu0 0.0
    %328 = vmatpush2.msra.mxu0 0.0
    %329 = vmatprep.subr.mxu0 0.0
    %330 = vmatpush2.msra.mxu0 0.0
    %331 = vmatprep.subr.mxu0 0.0
    %332 = vmatpush2.msra.mxu0 0.0
    %333 = vmatprep.subr.mxu0 0.0
    %334 = vmatpush2.msra.mxu0 0.0
    %335 = vmatprep.subr.mxu0 0.0
    %336 = vmatpush2.msra.mxu0 0.0
    %337 = vmatprep.subr.mxu0 0.0
    %338 = vmatpush2.msra.mxu0 0.0
    %339 = vmatprep.subr.mxu0 0.0
    %340 = vmatpush2.msra.mxu0 0.0
    %341 = vmatprep.subr.mxu0 0.0
    %342 = vmatpush2.msra.mxu0 0.0
    %343 = vmatprep.subr.mxu0 0.0
    %344 = vmatpush2.msra.mxu0 0.0
    %345 = vmatprep.mubr.f32.mxu0 0.0
    %346 = vmatmul.mubr.f32.gmra.mxu0 %v257
    %v347 = vpop.f32.mrf.mxu0
    %v348 = vadd.f32 %v279, %v347
    %v349 = vpop.f32.mrf.mxu0
    %350 = vdwg.mxu0
    %351 = vst [vmem:[#allocation10] sm:$0xff] %v348
    // Predicated region
    $region46: #{tpu_custom_call.1} parent=1 // pred_check
      _
    $region47: #{tpu_custom_call.1} parent=1 // pred_check_branch
      %353 = sbr.rel (0) target = $region49
    $region48: #{tpu_custom_call.1} parent=1 // pred_region
      %s355 = ssub.s32 128, 32
      %356 = vsyncadd [#allocation4], %s355
      %s357 = sshll.u32 [#allocation10], 4
      %s358 = int_to_ptr.vmem [resolvable:$true] %s357
      %363 = dma.vmem_to_hbm [thread:$0]  %s358, 32, %s7, [#allocation4], 32, 32, 2
    $region49: #{tpu_custom_call.1} parent=1 // pred_fallthru
      _
    // Predicated region
    $region50: #{tpu_custom_call.1} parent=1 // pred_check
      _
    $region51: #{tpu_custom_call.1} parent=1 // pred_check_branch
      %365 = sbr.rel (0) target = $region53
    $region52: #{tpu_custom_call.1} parent=1 // pred_region
      %366 = dma.done [#allocation4], 128
    $region53: #{tpu_custom_call.1} parent=1 // pred_fallthru
      _
    %367 = vsyncpa [#allocation3], 1
    %368 = vsyncpa [#allocation6], 1
    %369 = vsyncpa [#allocation9], 1
    %370 = vsyncpa [#allocation4], 1

</llo_original>
